<compile_context>
chip_gen: v7x
topology: tpu7x:2x2x1
jax: 0.10.0
libtpu: 0.0.40
codegen_flags: <defaults>
</compile_context>

<pallas_src>
import jax
import jax.numpy as jnp
import numpy as np
from jax.experimental import pallas as pl
from jax.experimental.pallas import tpu as pltpu

LRELU_SLOPE = 0.02
WIN_SIZE = 16
DIM_IN = 29
DIM_AUD = 64
K1 = DIM_IN * WIN_SIZE      # 464  (flattened conv-1 input, k = c*16 + t)
K1_PAD = 512                # pad to a lane-friendly multiple of 128


def _leaky(x):
    return jnp.where(x >= 0, x, LRELU_SLOPE * x)


def _round_up(n, m):
    return (n + m - 1) // m * m


def _const_index_map(nd):
    return lambda i: (0,) * nd


# ----------------------------------------------------------------------------
# One-time parameter re-layout: Conv1d(k=3, s=2, p=1) -> block-banded matmul.
# ----------------------------------------------------------------------------
def _banded_conv(w, b, l_in, k_pad=None):
    """Build the dense [C_in*L_in(_pad), C_out*L_out] matrix for one conv layer.

    Flattening order on BOTH sides: index = channel * length + position, which
    is exactly a row-major reshape of a [C, L] activation (and of the input
    [B, 29, 16] -> [B, 464]).
    """
    w = np.asarray(w, np.float32)            # [C_out, C_in, 3]
    b = np.asarray(b, np.float32)            # [C_out]
    c_out, c_in, _ = w.shape
    l_out = l_in // 2
    wb = np.zeros((c_in * l_in, c_out * l_out), np.float32)
    for l in range(l_out):
        for tap in range(3):
            t = 2 * l - 1 + tap              # padding = 1
            if 0 <= t < l_in:
                # rows ci*l_in + t, cols co*l_out + l
                wb[t::l_in, l::l_out] = w[:, :, tap].T       # [C_in, C_out]
    if k_pad is not None and k_pad > wb.shape[0]:
        wb = np.pad(wb, ((0, k_pad - wb.shape[0]), (0, 0)))
    bias = np.repeat(b, l_out).reshape(1, -1)                # [1, C_out*L_out]
    return jnp.asarray(wb, jnp.bfloat16), jnp.asarray(bias, jnp.float32)


def prepare_params(params):
    """PyTorch-layout params -> kernel layouts (bf16 weights, f32 biases)."""
    (w1, b1), (w2, b2), (w3, b3), (w4, b4), (fw1, fb1), (fw2, fb2) = params
    W1, B1 = _banded_conv(w1, b1, l_in=16, k_pad=K1_PAD)   # [512, 256]
    W2, B2 = _banded_conv(w2, b2, l_in=8)                  # [256, 128]
    W3, B3 = _banded_conv(w3, b3, l_in=4)                  # [128, 128]
    W4, B4 = _banded_conv(w4, b4, l_in=2)                  # [128,  64]
    F1 = jnp.asarray(np.asarray(fw1, np.float32).T, jnp.bfloat16)   # [64, 64]
    F2 = jnp.asarray(np.asarray(fw2, np.float32).T, jnp.bfloat16)   # [64, 64]
    FB1 = jnp.asarray(np.asarray(fb1, np.float32).reshape(1, -1), jnp.float32)
    FB2 = jnp.asarray(np.asarray(fb2, np.float32).reshape(1, -1), jnp.float32)
    return (W1, B1, W2, B2, W3, B3, W4, B4, F1, FB1, F2, FB2)


# ----------------------------------------------------------------------------
# Kernel
# ----------------------------------------------------------------------------
def audionet_kernel(x_ref,
                    w1, b1, w2, b2, w3, b3, w4, b4,
                    fw1, fb1, fw2, fb2,
                    out_ref):
    def layer(h, w_ref, b_ref):
        acc = jnp.dot(h, w_ref[...], preferred_element_type=jnp.float32)
        return _leaky(acc + b_ref[...]).astype(jnp.bfloat16)

    h = x_ref[...]                       # [bt, 512] bf16, k = c*16 + t
    h = layer(h, w1, b1)                 # [bt, 256]  conv1 (all 8 positions)
    h = layer(h, w2, b2)                 # [bt, 128]  conv2
    h = layer(h, w3, b3)                 # [bt, 128]  conv3
    h = layer(h, w4, b4)                 # [bt,  64]  conv4  == squeeze(-1)
    h = layer(h, fw1, fb1)               # [bt,  64]  fc1 + leaky
    y = jnp.dot(h, fw2[...], preferred_element_type=jnp.float32) + fb2[...]
    out_ref[...] = y.astype(out_ref.dtype)


# ----------------------------------------------------------------------------
# Wrapper
# ----------------------------------------------------------------------------
def audionet_forward(x_ncl, prepared, *, batch_tile=2048):
    """x_ncl: [B, 29, T>=16] (PyTorch NCL layout). Returns [B, dim_aud] f32."""
    B = x_ncl.shape[0]
    half_w = WIN_SIZE // 2
    xw = x_ncl[:, :, 8 - half_w:8 + half_w]            # [B, 29, 16]
    x_flat = xw.reshape(B, K1)                         # [B, 464], k = c*16 + t

    batch_tile = max(8, _round_up(batch_tile, 8))
    bt = min(batch_tile, _round_up(B, 8))
    # Prefer >= 2 grid steps when the batch allows it (v7x: 2 TensorCores).
    if _round_up(B, bt) // bt < 2 and B > 64:
        bt = _round_up((B + 1) // 2, 8)
    b_pad = _round_up(B, bt)
    nb = b_pad // bt

    # Single fused pad (batch rows + 464->512) and bf16 cast.
    x_flat = jnp.pad(x_flat, ((0, b_pad - B), (0, K1_PAD - K1)))
    x_flat = x_flat.astype(jnp.bfloat16)

    x_spec = pl.BlockSpec((bt, K1_PAD), lambda i: (i, 0))
    w_specs = [pl.BlockSpec(p.shape, _const_index_map(p.ndim))
               for p in prepared]
    out_spec = pl.BlockSpec((bt, DIM_AUD), lambda i: (i, 0))

    per_elem_flops = 2 * (K1_PAD * 256 + 256 * 128 + 128 * 128 + 128 * 64
                          + 64 * 64 + 64 * DIM_AUD)
    param_bytes = sum(int(p.size) * p.dtype.itemsize for p in prepared)
    cost = pl.CostEstimate(
        flops=per_elem_flops * b_pad,
        transcendentals=0,
        bytes_accessed=(int(x_flat.size) * x_flat.dtype.itemsize
                        + b_pad * DIM_AUD * 4
                        + param_bytes))                # weights fetched once

    out = pl.pallas_call(
        audionet_kernel,
        out_shape=jax.ShapeDtypeStruct((b_pad, DIM_AUD), jnp.float32),
        grid=(nb,),
        in_specs=[x_spec] + w_specs,
        out_specs=out_spec,
        compiler_params=pltpu.CompilerParams(
            dimension_semantics=("parallel",),
            vmem_limit_bytes=64 * 1024 * 1024),
        cost_estimate=cost,
    )(x_flat, *prepared)
    return out[:B]


# ----------------------------------------------------------------------------
# Deterministic init + pure-JAX reference (for verification)
# ----------------------------------------------------------------------------
def init_params(key):
    """PyTorch-style uniform(-1/sqrt(fan_in), 1/sqrt(fan_in)) init."""
    ks = jax.random.split(key, 12)

    def u(k, shape, fan_in):
        bound = 1.0 / np.sqrt(fan_in)
        return jax.random.uniform(k, shape, jnp.float32, -bound, bound)

    c1w = u(ks[0], (32, DIM_IN, 3), DIM_IN * 3); c1b = u(ks[1], (32,), DIM_IN * 3)
    c2w = u(ks[2], (32, 32, 3), 32 * 3);          c2b = u(ks[3], (32,), 32 * 3)
    c3w = u(ks[4], (64, 32, 3), 32 * 3);          c3b = u(ks[5], (64,), 32 * 3)
    c4w = u(ks[6], (64, 64, 3), 64 * 3);          c4b = u(ks[7], (64,), 64 * 3)
    f1w = u(ks[8], (64, 64), 64);                 f1b = u(ks[9], (64,), 64)
    f2w = u(ks[10], (DIM_AUD, 64), 64);           f2b = u(ks[11], (DIM_AUD,), 64)
    return ((c1w, c1b), (c2w, c2b), (c3w, c3b), (c4w, c4b),
            (f1w, f1b), (f2w, f2b))


def reference_forward(x_ncl, params):
    """Pure-JAX f32 mirror of the PyTorch forward."""
    half_w = WIN_SIZE // 2
    x = x_ncl[:, :, 8 - half_w:8 + half_w]

    def conv(x, w, b):
        y = jax.lax.conv_general_dilated(
            x, w, window_strides=(2,), padding=((1, 1),),
            dimension_numbers=('NCH', 'OIH', 'NCH'))
        y = y + b[None, :, None]
        return jnp.where(y >= 0, y, LRELU_SLOPE * y)

    (w1, b1), (w2, b2), (w3, b3), (w4, b4), (fw1, fb1), (fw2, fb2) = params
    x = conv(x, w1, b1)
    x = conv(x, w2, b2)
    x = conv(x, w3, b3)
    x = conv(x, w4, b4)
    x = x[:, :, 0]                               # squeeze(-1)
    x = x @ fw1.T + fb1
    x = jnp.where(x >= 0, x, LRELU_SLOPE * x)
    x = x @ fw2.T + fb2
    return x


if __name__ == "__main__":
    key = jax.random.PRNGKey(0)
    kx, kp = jax.random.split(key)

    B = 2
    x = jax.random.normal(kx, (B, DIM_IN, WIN_SIZE), jnp.float32)  # [2, 29, 16]
    params = init_params(kp)
    prepared = prepare_params(params)          # one-time weight re-layout

    out = jax.jit(audionet_forward)(x, prepared)
    out = jax.block_until_ready(out)

    ref = reference_forward(x, params)
    # bf16 operands with f32 accumulation -> slightly looser tolerance than f32.
    np.testing.assert_allclose(np.asarray(out), np.asarray(ref),
                               atol=2e-2, rtol=2e-2)
    print("KERNEL_OK")
</pallas_src>

<mosaic_0001>
module attributes {stable_mosaic.version = 11 : i64} {
  func.func @audionet_kernel(%arg0: i32, %arg1: memref<8x512xbf16, #tpu.memory_space<vmem>>, %arg2: memref<512x256xbf16, #tpu.memory_space<vmem>>, %arg3: memref<1x256xf32, #tpu.memory_space<vmem>>, %arg4: memref<256x128xbf16, #tpu.memory_space<vmem>>, %arg5: memref<1x128xf32, #tpu.memory_space<vmem>>, %arg6: memref<128x128xbf16, #tpu.memory_space<vmem>>, %arg7: memref<1x128xf32, #tpu.memory_space<vmem>>, %arg8: memref<128x64xbf16, #tpu.memory_space<vmem>>, %arg9: memref<1x64xf32, #tpu.memory_space<vmem>>, %arg10: memref<64x64xbf16, #tpu.memory_space<vmem>>, %arg11: memref<1x64xf32, #tpu.memory_space<vmem>>, %arg12: memref<64x64xbf16, #tpu.memory_space<vmem>>, %arg13: memref<1x64xf32, #tpu.memory_space<vmem>>, %arg14: memref<8x64xf32, #tpu.memory_space<vmem>>) attributes {dimension_semantics = [#tpu.dimension_semantics<parallel>], iteration_bounds = array<i64: 1>, scalar_prefetch = 0 : i64, scratch_operands = 0 : i64, tpu.core_type = #tpu.core_type<tc>, window_params = [{transform_indices = @transform_0, window_bounds = array<i64: 8, 512>}, {pipeline_mode = #tpu.pipeline_mode<synchronous>, transform_indices = @transform_1, window_bounds = array<i64: 512, 256>}, {pipeline_mode = #tpu.pipeline_mode<synchronous>, transform_indices = @transform_2, window_bounds = array<i64: 1, 256>}, {pipeline_mode = #tpu.pipeline_mode<synchronous>, transform_indices = @transform_3, window_bounds = array<i64: 256, 128>}, {pipeline_mode = #tpu.pipeline_mode<synchronous>, transform_indices = @transform_4, window_bounds = array<i64: 1, 128>}, {pipeline_mode = #tpu.pipeline_mode<synchronous>, transform_indices = @transform_5, window_bounds = array<i64: 128, 128>}, {pipeline_mode = #tpu.pipeline_mode<synchronous>, transform_indices = @transform_6, window_bounds = array<i64: 1, 128>}, {pipeline_mode = #tpu.pipeline_mode<synchronous>, transform_indices = @transform_7, window_bounds = array<i64: 128, 64>}, {pipeline_mode = #tpu.pipeline_mode<synchronous>, transform_indices = @transform_8, window_bounds = array<i64: 1, 64>}, {pipeline_mode = #tpu.pipeline_mode<synchronous>, transform_indices = @transform_9, window_bounds = array<i64: 64, 64>}, {pipeline_mode = #tpu.pipeline_mode<synchronous>, transform_indices = @transform_10, window_bounds = array<i64: 1, 64>}, {pipeline_mode = #tpu.pipeline_mode<synchronous>, transform_indices = @transform_11, window_bounds = array<i64: 64, 64>}, {pipeline_mode = #tpu.pipeline_mode<synchronous>, transform_indices = @transform_12, window_bounds = array<i64: 1, 64>}, {transform_indices = @transform_13, window_bounds = array<i64: 8, 64>}]} {
    %c0 = arith.constant 0 : index
    %c0_0 = arith.constant 0 : index
    %0 = vector.load %arg1[%c0, %c0_0] : memref<8x512xbf16, #tpu.memory_space<vmem>>, vector<8x512xbf16>
    %c0_1 = arith.constant 0 : index
    %c0_2 = arith.constant 0 : index
    %1 = vector.load %arg2[%c0_1, %c0_2] : memref<512x256xbf16, #tpu.memory_space<vmem>>, vector<512x256xbf16>
    %cst = arith.constant dense<0.000000e+00> : vector<8x256xf32>
    %2 = tpu.matmul %0, %1, %cst {dimension_numbers = #tpu.dot_dimension_numbers<[1], [0], [0], [1], [0, 0, 1, 1], [], []>} : vector<8x512xbf16>, vector<512x256xbf16>, vector<8x256xf32> -> vector<8x256xf32>
    %c0_3 = arith.constant 0 : index
    %c0_4 = arith.constant 0 : index
    %3 = vector.load %arg3[%c0_3, %c0_4] : memref<1x256xf32, #tpu.memory_space<vmem>>, vector<1x256xf32>
    %4 = vector.broadcast %3 : vector<1x256xf32> to vector<8x256xf32>
    %5 = arith.addf %2, %4 : vector<8x256xf32>
    %cst_5 = arith.constant 0.000000e+00 : f32
    %6 = vector.broadcast %cst_5 : f32 to vector<8x256xf32>
    %7 = arith.cmpf oge, %5, %6 : vector<8x256xf32>
    %cst_6 = arith.constant 2.000000e-02 : f32
    %8 = vector.broadcast %cst_6 : f32 to vector<8x256xf32>
    %9 = arith.mulf %8, %5 : vector<8x256xf32>
    %10 = arith.select %7, %5, %9 : vector<8x256xi1>, vector<8x256xf32>
    %11 = arith.truncf %10 : vector<8x256xf32> to vector<8x256xbf16>
    %c0_7 = arith.constant 0 : index
    %c0_8 = arith.constant 0 : index
    %12 = vector.load %arg4[%c0_7, %c0_8] : memref<256x128xbf16, #tpu.memory_space<vmem>>, vector<256x128xbf16>
    %cst_9 = arith.constant dense<0.000000e+00> : vector<8x128xf32>
    %13 = tpu.matmul %11, %12, %cst_9 {dimension_numbers = #tpu.dot_dimension_numbers<[1], [0], [0], [1], [0, 0, 1, 1], [], []>} : vector<8x256xbf16>, vector<256x128xbf16>, vector<8x128xf32> -> vector<8x128xf32>
    %c0_10 = arith.constant 0 : index
    %c0_11 = arith.constant 0 : index
    %14 = vector.load %arg5[%c0_10, %c0_11] : memref<1x128xf32, #tpu.memory_space<vmem>>, vector<1x128xf32>
    %15 = vector.broadcast %14 : vector<1x128xf32> to vector<8x128xf32>
    %16 = arith.addf %13, %15 : vector<8x128xf32>
    %cst_12 = arith.constant 0.000000e+00 : f32
    %17 = vector.broadcast %cst_12 : f32 to vector<8x128xf32>
    %18 = arith.cmpf oge, %16, %17 : vector<8x128xf32>
    %cst_13 = arith.constant 2.000000e-02 : f32
    %19 = vector.broadcast %cst_13 : f32 to vector<8x128xf32>
    %20 = arith.mulf %19, %16 : vector<8x128xf32>
    %21 = arith.select %18, %16, %20 : vector<8x128xi1>, vector<8x128xf32>
    %22 = arith.truncf %21 : vector<8x128xf32> to vector<8x128xbf16>
    %c0_14 = arith.constant 0 : index
    %c0_15 = arith.constant 0 : index
    %23 = vector.load %arg6[%c0_14, %c0_15] : memref<128x128xbf16, #tpu.memory_space<vmem>>, vector<128x128xbf16>
    %cst_16 = arith.constant dense<0.000000e+00> : vector<8x128xf32>
    %24 = tpu.matmul %22, %23, %cst_16 {dimension_numbers = #tpu.dot_dimension_numbers<[1], [0], [0], [1], [0, 0, 1, 1], [], []>} : vector<8x128xbf16>, vector<128x128xbf16>, vector<8x128xf32> -> vector<8x128xf32>
    %c0_17 = arith.constant 0 : index
    %c0_18 = arith.constant 0 : index
    %25 = vector.load %arg7[%c0_17, %c0_18] : memref<1x128xf32, #tpu.memory_space<vmem>>, vector<1x128xf32>
    %26 = vector.broadcast %25 : vector<1x128xf32> to vector<8x128xf32>
    %27 = arith.addf %24, %26 : vector<8x128xf32>
    %cst_19 = arith.constant 0.000000e+00 : f32
    %28 = vector.broadcast %cst_19 : f32 to vector<8x128xf32>
    %29 = arith.cmpf oge, %27, %28 : vector<8x128xf32>
    %cst_20 = arith.constant 2.000000e-02 : f32
    %30 = vector.broadcast %cst_20 : f32 to vector<8x128xf32>
    %31 = arith.mulf %30, %27 : vector<8x128xf32>
    %32 = arith.select %29, %27, %31 : vector<8x128xi1>, vector<8x128xf32>
    %33 = arith.truncf %32 : vector<8x128xf32> to vector<8x128xbf16>
    %c0_21 = arith.constant 0 : index
    %c0_22 = arith.constant 0 : index
    %34 = vector.load %arg8[%c0_21, %c0_22] : memref<128x64xbf16, #tpu.memory_space<vmem>>, vector<128x64xbf16>
    %cst_23 = arith.constant dense<0.000000e+00> : vector<8x64xf32>
    %35 = tpu.matmul %33, %34, %cst_23 {dimension_numbers = #tpu.dot_dimension_numbers<[1], [0], [0], [1], [0, 0, 1, 1], [], []>} : vector<8x128xbf16>, vector<128x64xbf16>, vector<8x64xf32> -> vector<8x64xf32>
    %c0_24 = arith.constant 0 : index
    %c0_25 = arith.constant 0 : index
    %36 = vector.load %arg9[%c0_24, %c0_25] : memref<1x64xf32, #tpu.memory_space<vmem>>, vector<1x64xf32>
    %37 = vector.broadcast %36 : vector<1x64xf32> to vector<8x64xf32>
    %38 = arith.addf %35, %37 : vector<8x64xf32>
    %cst_26 = arith.constant 0.000000e+00 : f32
    %39 = vector.broadcast %cst_26 : f32 to vector<8x64xf32>
    %40 = arith.cmpf oge, %38, %39 : vector<8x64xf32>
    %cst_27 = arith.constant 2.000000e-02 : f32
    %41 = vector.broadcast %cst_27 : f32 to vector<8x64xf32>
    %42 = arith.mulf %41, %38 : vector<8x64xf32>
    %43 = arith.select %40, %38, %42 : vector<8x64xi1>, vector<8x64xf32>
    %44 = arith.truncf %43 : vector<8x64xf32> to vector<8x64xbf16>
    %c0_28 = arith.constant 0 : index
    %c0_29 = arith.constant 0 : index
    %45 = vector.load %arg10[%c0_28, %c0_29] : memref<64x64xbf16, #tpu.memory_space<vmem>>, vector<64x64xbf16>
    %cst_30 = arith.constant dense<0.000000e+00> : vector<8x64xf32>
    %46 = tpu.matmul %44, %45, %cst_30 {dimension_numbers = #tpu.dot_dimension_numbers<[1], [0], [0], [1], [0, 0, 1, 1], [], []>} : vector<8x64xbf16>, vector<64x64xbf16>, vector<8x64xf32> -> vector<8x64xf32>
    %c0_31 = arith.constant 0 : index
    %c0_32 = arith.constant 0 : index
    %47 = vector.load %arg11[%c0_31, %c0_32] : memref<1x64xf32, #tpu.memory_space<vmem>>, vector<1x64xf32>
    %48 = vector.broadcast %47 : vector<1x64xf32> to vector<8x64xf32>
    %49 = arith.addf %46, %48 : vector<8x64xf32>
    %cst_33 = arith.constant 0.000000e+00 : f32
    %50 = vector.broadcast %cst_33 : f32 to vector<8x64xf32>
    %51 = arith.cmpf oge, %49, %50 : vector<8x64xf32>
    %cst_34 = arith.constant 2.000000e-02 : f32
    %52 = vector.broadcast %cst_34 : f32 to vector<8x64xf32>
    %53 = arith.mulf %52, %49 : vector<8x64xf32>
    %54 = arith.select %51, %49, %53 : vector<8x64xi1>, vector<8x64xf32>
    %55 = arith.truncf %54 : vector<8x64xf32> to vector<8x64xbf16>
    %c0_35 = arith.constant 0 : index
    %c0_36 = arith.constant 0 : index
    %56 = vector.load %arg12[%c0_35, %c0_36] : memref<64x64xbf16, #tpu.memory_space<vmem>>, vector<64x64xbf16>
    %cst_37 = arith.constant dense<0.000000e+00> : vector<8x64xf32>
    %57 = tpu.matmul %55, %56, %cst_37 {dimension_numbers = #tpu.dot_dimension_numbers<[1], [0], [0], [1], [0, 0, 1, 1], [], []>} : vector<8x64xbf16>, vector<64x64xbf16>, vector<8x64xf32> -> vector<8x64xf32>
    %c0_38 = arith.constant 0 : index
    %c0_39 = arith.constant 0 : index
    %58 = vector.load %arg13[%c0_38, %c0_39] : memref<1x64xf32, #tpu.memory_space<vmem>>, vector<1x64xf32>
    %59 = vector.broadcast %58 : vector<1x64xf32> to vector<8x64xf32>
    %60 = arith.addf %57, %59 : vector<8x64xf32>
    %c0_40 = arith.constant 0 : index
    %c0_41 = arith.constant 0 : index
    %61 = vector.load %arg14[%c0_40, %c0_41] : memref<8x64xf32, #tpu.memory_space<vmem>>, vector<8x64xf32>
    tpu.vector_store %arg14[%c0_40, %c0_41], %60 {strides = array<i32>} : memref<8x64xf32, #tpu.memory_space<vmem>>, vector<8x64xf32>,
    return
  }
  func.func @transform_0(%arg0: i32) -> (i32, i32) {
    %c0_i32 = arith.constant 0 : i32
    %c0_i32_0 = arith.constant 0 : i32
    return %arg0, %c0_i32 : i32, i32
  }
  func.func @transform_1(%arg0: i32) -> (i32, i32) {
    %c0_i32 = arith.constant 0 : i32
    %c0_i32_0 = arith.constant 0 : i32
    %c0_i32_1 = arith.constant 0 : i32
    return %c0_i32, %c0_i32_0 : i32, i32
  }
  func.func @transform_2(%arg0: i32) -> (i32, i32) {
    %c0_i32 = arith.constant 0 : i32
    %c0_i32_0 = arith.constant 0 : i32
    %c0_i32_1 = arith.constant 0 : i32
    return %c0_i32, %c0_i32_0 : i32, i32
  }
  func.func @transform_3(%arg0: i32) -> (i32, i32) {
    %c0_i32 = arith.constant 0 : i32
    %c0_i32_0 = arith.constant 0 : i32
    %c0_i32_1 = arith.constant 0 : i32
    return %c0_i32, %c0_i32_0 : i32, i32
  }
  func.func @transform_4(%arg0: i32) -> (i32, i32) {
    %c0_i32 = arith.constant 0 : i32
    %c0_i32_0 = arith.constant 0 : i32
    %c0_i32_1 = arith.constant 0 : i32
    return %c0_i32, %c0_i32_0 : i32, i32
  }
  func.func @transform_5(%arg0: i32) -> (i32, i32) {
    %c0_i32 = arith.constant 0 : i32
    %c0_i32_0 = arith.constant 0 : i32
    %c0_i32_1 = arith.constant 0 : i32
    return %c0_i32, %c0_i32_0 : i32, i32
  }
  func.func @transform_6(%arg0: i32) -> (i32, i32) {
    %c0_i32 = arith.constant 0 : i32
    %c0_i32_0 = arith.constant 0 : i32
    %c0_i32_1 = arith.constant 0 : i32
    return %c0_i32, %c0_i32_0 : i32, i32
  }
  func.func @transform_7(%arg0: i32) -> (i32, i32) {
    %c0_i32 = arith.constant 0 : i32
    %c0_i32_0 = arith.constant 0 : i32
    %c0_i32_1 = arith.constant 0 : i32
    return %c0_i32, %c0_i32_0 : i32, i32
  }
  func.func @transform_8(%arg0: i32) -> (i32, i32) {
    %c0_i32 = arith.constant 0 : i32
    %c0_i32_0 = arith.constant 0 : i32
    %c0_i32_1 = arith.constant 0 : i32
    return %c0_i32, %c0_i32_0 : i32, i32
  }
  func.func @transform_9(%arg0: i32) -> (i32, i32) {
    %c0_i32 = arith.constant 0 : i32
    %c0_i32_0 = arith.constant 0 : i32
    %c0_i32_1 = arith.constant 0 : i32
    return %c0_i32, %c0_i32_0 : i32, i32
  }
  func.func @transform_10(%arg0: i32) -> (i32, i32) {
    %c0_i32 = arith.constant 0 : i32
    %c0_i32_0 = arith.constant 0 : i32
    %c0_i32_1 = arith.constant 0 : i32
    return %c0_i32, %c0_i32_0 : i32, i32
  }
  func.func @transform_11(%arg0: i32) -> (i32, i32) {
    %c0_i32 = arith.constant 0 : i32
    %c0_i32_0 = arith.constant 0 : i32
    %c0_i32_1 = arith.constant 0 : i32
    return %c0_i32, %c0_i32_0 : i32, i32
  }
  func.func @transform_12(%arg0: i32) -> (i32, i32) {
    %c0_i32 = arith.constant 0 : i32
    %c0_i32_0 = arith.constant 0 : i32
    %c0_i32_1 = arith.constant 0 : i32
    return %c0_i32, %c0_i32_0 : i32, i32
  }
  func.func @transform_13(%arg0: i32) -> (i32, i32) {
    %c0_i32 = arith.constant 0 : i32
    %c0_i32_0 = arith.constant 0 : i32
    return %arg0, %c0_i32 : i32, i32
  }
}

</mosaic_0001>

<llo_original>
// kernel: audionet_forward.1
$region0: #{audionet_forward.1}
  #allocation0 [shape = 'u32[]', space=smem, size = 0x4, offset = 0x4, fixed_abs, tag = 'smem constant byte address 0x4 - core index']
  #allocation1 [shape = 'u32[144,128]{1,0:T(1,128)}', space=vmem, size = 0x12000, scoped, tag = 'internal scratch']
  %s0 = inlined_call_operand.hbm [shape: bf16[8,512], index: 0, kind: input, shape index: {}]
  %s1 = inlined_call_operand.hbm [shape: bf16[512,256], index: 1, kind: input, shape index: {}]
  %s2 = inlined_call_operand.hbm [shape: f32[1,256], index: 2, kind: input, shape index: {}]
  %s3 = inlined_call_operand.hbm [shape: bf16[256,128], index: 3, kind: input, shape index: {}]
  %s4 = inlined_call_operand.hbm [shape: f32[1,128], index: 4, kind: input, shape index: {}]
  %s5 = inlined_call_operand.hbm [shape: bf16[128,128], index: 5, kind: input, shape index: {}]
  %s6 = inlined_call_operand.hbm [shape: f32[1,128], index: 6, kind: input, shape index: {}]
  %s7 = inlined_call_operand.hbm [shape: bf16[128,64], index: 7, kind: input, shape index: {}]
  %s8 = inlined_call_operand.hbm [shape: f32[1,64], index: 8, kind: input, shape index: {}]
  %s9 = inlined_call_operand.hbm [shape: bf16[64,64], index: 9, kind: input, shape index: {}]
  %s10 = inlined_call_operand.hbm [shape: f32[1,64], index: 10, kind: input, shape index: {}]
  %s11 = inlined_call_operand.hbm [shape: bf16[64,64], index: 11, kind: input, shape index: {}]
  %s12 = inlined_call_operand.hbm [shape: f32[1,64], index: 12, kind: input, shape index: {}]
  %s13 = inlined_call_operand.hbm [shape: f32[8,64], index: 13, kind: output, shape index: {}]
  %s14 = sld [smem:[#allocation0]]
  $region114: #{audionet_forward.1} parent=0
    _
  %s16 = ssub.s32 1, %s14
  %s17 = scalar_select 0, %s16, %s14
  $region1: #{audionet_forward.1} parent=0
    #allocation2 [shape = 'u8[8192]{0}', space=vmem, size = 0x2000, scoped, tag = 'input window, operand 0, single buffered']
    #allocation3 [shape = 's32[1]{0}', space=sflag, size = 0x4, scoped, tag = 'scoped memory for audionet_forward.1']
    #allocation4 [shape = 's32[1]{0}', space=sflag, size = 0x4, scoped, tag = 'scoped memory for audionet_forward.1']
    #allocation5 [shape = 'u8[262144]{0}', space=vmem, size = 0x40000, scoped, tag = 'input window, operand 1, single buffered']
    #allocation6 [shape = 's32[1]{0}', space=sflag, size = 0x4, scoped, tag = 'scoped memory for audionet_forward.1']
    #allocation7 [shape = 'u8[1024]{0}', space=vmem, size = 0x400, scoped, tag = 'input window, operand 2, single buffered']
    #allocation8 [shape = 'u8[65536]{0}', space=vmem, size = 0x10000, scoped, tag = 'input window, operand 3, single buffered']
    #allocation9 [shape = 's32[1]{0}', space=sflag, size = 0x4, scoped, tag = 'scoped memory for audionet_forward.1']
    #allocation10 [shape = 'u8[512]{0}', space=vmem, size = 0x400, scoped, tag = 'input window, operand 4, single buffered']
    #allocation11 [shape = 'u8[32768]{0}', space=vmem, size = 0x8000, scoped, tag = 'input window, operand 5, single buffered']
    #allocation12 [shape = 's32[1]{0}', space=sflag, size = 0x4, scoped, tag = 'scoped memory for audionet_forward.1']
    #allocation13 [shape = 'u8[512]{0}', space=vmem, size = 0x400, scoped, tag = 'input window, operand 6, single buffered']
    #allocation14 [shape = 'u8[32768]{0}', space=vmem, size = 0x8000, scoped, tag = 'input window, operand 7, single buffered']
    #allocation15 [shape = 's32[1]{0}', space=sflag, size = 0x4, scoped, tag = 'scoped memory for audionet_forward.1']
    #allocation16 [shape = 'u8[512]{0}', space=vmem, size = 0x400, scoped, tag = 'input window, operand 8, single buffered']
    #allocation17 [shape = 'u8[16384]{0}', space=vmem, size = 0x4000, scoped, tag = 'input window, operand 9, single buffered']
    #allocation18 [shape = 's32[1]{0}', space=sflag, size = 0x4, scoped, tag = 'scoped memory for audionet_forward.1']
    #allocation19 [shape = 'u8[512]{0}', space=vmem, size = 0x400, scoped, tag = 'input window, operand 10, single buffered']
    #allocation20 [shape = 'u8[16384]{0}', space=vmem, size = 0x4000, scoped, tag = 'input window, operand 11, single buffered']
    #allocation21 [shape = 's32[1]{0}', space=sflag, size = 0x4, scoped, tag = 'scoped memory for audionet_forward.1']
    #allocation22 [shape = 'u8[512]{0}', space=vmem, size = 0x400, scoped, tag = 'input window, operand 12, single buffered']
    #allocation23 [shape = 'u8[4096]{0}', space=vmem, size = 0x1000, scoped, tag = 'output window, operand 0, single buffered']
    %18 = vsyncpa [#allocation3], 0
    %19 = vsyncpa [#allocation6], 0
    %20 = vsyncpa [#allocation9], 0
    %21 = vsyncpa [#allocation12], 0
    %22 = vsyncpa [#allocation15], 0
    %23 = vsyncpa [#allocation18], 0
    %24 = vsyncpa [#allocation21], 0
    %25 = vsyncpa [#allocation4], 0
    // Predicated region
    $region2: #{audionet_forward.1} parent=1 // pred_check
      _
    $region3: #{audionet_forward.1} parent=1 // pred_check_branch
      %27 = sbr.rel (0) target = $region5
    $region4: #{audionet_forward.1} parent=1 // pred_region
      %s29 = ssub.s32 256, 256
      %30 = vsyncadd [#allocation3], %s29
      %s32 = sshll.u32 [#allocation2], 4
      %s33 = int_to_ptr.vmem [resolvable:$true] %s32
      %35 = dma.hbm_to_vmem [thread:$0]  %s0, 256, %s33, [#allocation3]
    $region5: #{audionet_forward.1} parent=1 // pred_fallthru
      _
    // Predicated region
    $region6: #{audionet_forward.1} parent=1 // pred_check
      _
    $region7: #{audionet_forward.1} parent=1 // pred_check_branch
      %37 = sbr.rel (0) target = $region9
    $region8: #{audionet_forward.1} parent=1 // pred_region
      %s39 = ssub.s32 8192, 8192
      %40 = vsyncadd [#allocation6], %s39
      %s41 = sshll.u32 [#allocation5], 4
      %s42 = int_to_ptr.vmem [resolvable:$true] %s41
      %47 = dma.hbm_to_vmem [thread:$0]  %s1, 8192, %s42, [#allocation6], 128, 128, 8
    $region9: #{audionet_forward.1} parent=1 // pred_fallthru
      _
    // Predicated region
    $region10: #{audionet_forward.1} parent=1 // pred_check
      _
    $region11: #{audionet_forward.1} parent=1 // pred_check_branch
      %49 = sbr.rel (0) target = $region13
    $region12: #{audionet_forward.1} parent=1 // pred_region
      %s51 = ssub.s32 32, 32
      %52 = vsyncadd [#allocation6], %s51
      %s54 = sshll.u32 [#allocation7], 4
      %s55 = int_to_ptr.vmem [resolvable:$true] %s54
      %57 = dma.hbm_to_vmem [thread:$0]  %s2, 32, %s55, [#allocation6]
    $region13: #{audionet_forward.1} parent=1 // pred_fallthru
      _
    // Predicated region
    $region14: #{audionet_forward.1} parent=1 // pred_check
      _
    $region15: #{audionet_forward.1} parent=1 // pred_check_branch
      %59 = sbr.rel (0) target = $region17
    $region16: #{audionet_forward.1} parent=1 // pred_region
      %s61 = ssub.s32 2048, 2048
      %62 = vsyncadd [#allocation9], %s61
      %s63 = sshll.u32 [#allocation8], 4
      %s64 = int_to_ptr.vmem [resolvable:$true] %s63
      %69 = dma.hbm_to_vmem [thread:$0]  %s3, 2048, %s64, [#allocation9], 64, 64, 4
    $region17: #{audionet_forward.1} parent=1 // pred_fallthru
      _
    // Predicated region
    $region18: #{audionet_forward.1} parent=1 // pred_check
      _
    $region19: #{audionet_forward.1} parent=1 // pred_check_branch
      %71 = sbr.rel (0) target = $region21
    $region20: #{audionet_forward.1} parent=1 // pred_region
      %s73 = ssub.s32 16, 16
      %74 = vsyncadd [#allocation9], %s73
      %s76 = sshll.u32 [#allocation10], 4
      %s77 = int_to_ptr.vmem [resolvable:$true] %s76
      %79 = dma.hbm_to_vmem [thread:$0]  %s4, 16, %s77, [#allocation9]
    $region21: #{audionet_forward.1} parent=1 // pred_fallthru
      _
    // Predicated region
    $region22: #{audionet_forward.1} parent=1 // pred_check
      _
    $region23: #{audionet_forward.1} parent=1 // pred_check_branch
      %81 = sbr.rel (0) target = $region25
    $region24: #{audionet_forward.1} parent=1 // pred_region
      %s83 = ssub.s32 1024, 1024
      %84 = vsyncadd [#allocation12], %s83
      %s85 = sshll.u32 [#allocation11], 4
      %s86 = int_to_ptr.vmem [resolvable:$true] %s85
      %91 = dma.hbm_to_vmem [thread:$0]  %s5, 1024, %s86, [#allocation12], 64, 64, 4
    $region25: #{audionet_forward.1} parent=1 // pred_fallthru
      _
    // Predicated region
    $region26: #{audionet_forward.1} parent=1 // pred_check
      _
    $region27: #{audionet_forward.1} parent=1 // pred_check_branch
      %93 = sbr.rel (0) target = $region29
    $region28: #{audionet_forward.1} parent=1 // pred_region
      %s95 = ssub.s32 16, 16
      %96 = vsyncadd [#allocation12], %s95
      %s98 = sshll.u32 [#allocation13], 4
      %s99 = int_to_ptr.vmem [resolvable:$true] %s98
      %101 = dma.hbm_to_vmem [thread:$0]  %s6, 16, %s99, [#allocation12]
    $region29: #{audionet_forward.1} parent=1 // pred_fallthru
      _
    // Predicated region
    $region30: #{audionet_forward.1} parent=1 // pred_check
      _
    $region31: #{audionet_forward.1} parent=1 // pred_check_branch
      %103 = sbr.rel (0) target = $region33
    $region32: #{audionet_forward.1} parent=1 // pred_region
      %s105 = ssub.s32 1024, 1024
      %106 = vsyncadd [#allocation15], %s105
      %s107 = sshll.u32 [#allocation14], 4
      %s108 = int_to_ptr.vmem [resolvable:$true] %s107
      %113 = dma.hbm_to_vmem [thread:$0]  %s7, 1024, %s108, [#allocation15], 64, 64, 4
    $region33: #{audionet_forward.1} parent=1 // pred_fallthru
      _
    // Predicated region
    $region34: #{audionet_forward.1} parent=1 // pred_check
      _
    $region35: #{audionet_forward.1} parent=1 // pred_check_branch
      %115 = sbr.rel (0) target = $region37
    $region36: #{audionet_forward.1} parent=1 // pred_region
      %s117 = ssub.s32 16, 16
      %118 = vsyncadd [#allocation15], %s117
      %s120 = sshll.u32 [#allocation16], 4
      %s121 = int_to_ptr.vmem [resolvable:$true] %s120
      %123 = dma.hbm_to_vmem [thread:$0]  %s8, 16, %s121, [#allocation15]
    $region37: #{audionet_forward.1} parent=1 // pred_fallthru
      _
    // Predicated region
    $region38: #{audionet_forward.1} parent=1 // pred_check
      _
    $region39: #{audionet_forward.1} parent=1 // pred_check_branch
      %125 = sbr.rel (0) target = $region41
    $region40: #{audionet_forward.1} parent=1 // pred_region
      %s127 = ssub.s32 512, 512
      %128 = vsyncadd [#allocation18], %s127
      %s129 = sshll.u32 [#allocation17], 4
      %s130 = int_to_ptr.vmem [resolvable:$true] %s129
      %135 = dma.hbm_to_vmem [thread:$0]  %s9, 512, %s130, [#allocation18], 64, 64, 4
    $region41: #{audionet_forward.1} parent=1 // pred_fallthru
      _
    // Predicated region
    $region42: #{audionet_forward.1} parent=1 // pred_check
      _
    $region43: #{audionet_forward.1} parent=1 // pred_check_branch
      %137 = sbr.rel (0) target = $region45
    $region44: #{audionet_forward.1} parent=1 // pred_region
      %s139 = ssub.s32 16, 16
      %140 = vsyncadd [#allocation18], %s139
      %s142 = sshll.u32 [#allocation19], 4
      %s143 = int_to_ptr.vmem [resolvable:$true] %s142
      %145 = dma.hbm_to_vmem [thread:$0]  %s10, 16, %s143, [#allocation18]
    $region45: #{audionet_forward.1} parent=1 // pred_fallthru
      _
    // Predicated region
    $region46: #{audionet_forward.1} parent=1 // pred_check
      _
    $region47: #{audionet_forward.1} parent=1 // pred_check_branch
      %147 = sbr.rel (0) target = $region49
    $region48: #{audionet_forward.1} parent=1 // pred_region
      %s149 = ssub.s32 512, 512
      %150 = vsyncadd [#allocation21], %s149
      %s151 = sshll.u32 [#allocation20], 4
      %s152 = int_to_ptr.vmem [resolvable:$true] %s151
      %157 = dma.hbm_to_vmem [thread:$0]  %s11, 512, %s152, [#allocation21], 64, 64, 4
    $region49: #{audionet_forward.1} parent=1 // pred_fallthru
      _
    // Predicated region
    $region50: #{audionet_forward.1} parent=1 // pred_check
      _
    $region51: #{audionet_forward.1} parent=1 // pred_check_branch
      %159 = sbr.rel (0) target = $region53
    $region52: #{audionet_forward.1} parent=1 // pred_region
      %s161 = ssub.s32 16, 16
      %162 = vsyncadd [#allocation21], %s161
      %s164 = sshll.u32 [#allocation22], 4
      %s165 = int_to_ptr.vmem [resolvable:$true] %s164
      %167 = dma.hbm_to_vmem [thread:$0]  %s12, 16, %s165, [#allocation21]
    $region53: #{audionet_forward.1} parent=1 // pred_fallthru
      _
    // Predicated region
    $region54: #{audionet_forward.1} parent=1 // pred_check
      _
    $region55: #{audionet_forward.1} parent=1 // pred_check_branch
      %169 = sbr.rel (0) target = $region57
    $region56: #{audionet_forward.1} parent=1 // pred_region
      %170 = dma.done [#allocation3], 256
    $region57: #{audionet_forward.1} parent=1 // pred_fallthru
      _
    // Predicated region
    $region58: #{audionet_forward.1} parent=1 // pred_check
      _
    $region59: #{audionet_forward.1} parent=1 // pred_check_branch
      %172 = sbr.rel (0) target = $region61
    $region60: #{audionet_forward.1} parent=1 // pred_region
      %173 = dma.done [#allocation6], 8192
    $region61: #{audionet_forward.1} parent=1 // pred_fallthru
      _
    // Predicated region
    $region62: #{audionet_forward.1} parent=1 // pred_check
      _
    $region63: #{audionet_forward.1} parent=1 // pred_check_branch
      %175 = sbr.rel (0) target = $region65
    $region64: #{audionet_forward.1} parent=1 // pred_region
      %176 = dma.done [#allocation6], 32
    $region65: #{audionet_forward.1} parent=1 // pred_fallthru
      _
    // Predicated region
    $region66: #{audionet_forward.1} parent=1 // pred_check
      _
    $region67: #{audionet_forward.1} parent=1 // pred_check_branch
      %178 = sbr.rel (0) target = $region69
    $region68: #{audionet_forward.1} parent=1 // pred_region
      %179 = dma.done [#allocation9], 2048
    $region69: #{audionet_forward.1} parent=1 // pred_fallthru
      _
    // Predicated region
    $region70: #{audionet_forward.1} parent=1 // pred_check
      _
    $region71: #{audionet_forward.1} parent=1 // pred_check_branch
      %181 = sbr.rel (0) target = $region73
    $region72: #{audionet_forward.1} parent=1 // pred_region
      %182 = dma.done [#allocation9], 16
    $region73: #{audionet_forward.1} parent=1 // pred_fallthru
      _
    // Predicated region
    $region74: #{audionet_forward.1} parent=1 // pred_check
      _
    $region75: #{audionet_forward.1} parent=1 // pred_check_branch
      %184 = sbr.rel (0) target = $region77
    $region76: #{audionet_forward.1} parent=1 // pred_region
      %185 = dma.done [#allocation12], 1024
    $region77: #{audionet_forward.1} parent=1 // pred_fallthru
      _
    // Predicated region
    $region78: #{audionet_forward.1} parent=1 // pred_check
      _
    $region79: #{audionet_forward.1} parent=1 // pred_check_branch
      %187 = sbr.rel (0) target = $region81
    $region80: #{audionet_forward.1} parent=1 // pred_region
      %188 = dma.done [#allocation12], 16
    $region81: #{audionet_forward.1} parent=1 // pred_fallthru
      _
    // Predicated region
    $region82: #{audionet_forward.1} parent=1 // pred_check
      _
    $region83: #{audionet_forward.1} parent=1 // pred_check_branch
      %190 = sbr.rel (0) target = $region85
    $region84: #{audionet_forward.1} parent=1 // pred_region
      %191 = dma.done [#allocation15], 1024
    $region85: #{audionet_forward.1} parent=1 // pred_fallthru
      _
    // Predicated region
    $region86: #{audionet_forward.1} parent=1 // pred_check
      _
    $region87: #{audionet_forward.1} parent=1 // pred_check_branch
      %193 = sbr.rel (0) target = $region89
    $region88: #{audionet_forward.1} parent=1 // pred_region
      %194 = dma.done [#allocation15], 16
    $region89: #{audionet_forward.1} parent=1 // pred_fallthru
      _
    // Predicated region
    $region90: #{audionet_forward.1} parent=1 // pred_check
      _
    $region91: #{audionet_forward.1} parent=1 // pred_check_branch
      %196 = sbr.rel (0) target = $region93
    $region92: #{audionet_forward.1} parent=1 // pred_region
      %197 = dma.done [#allocation18], 512
    $region93: #{audionet_forward.1} parent=1 // pred_fallthru
      _
    // Predicated region
    $region94: #{audionet_forward.1} parent=1 // pred_check
      _
    $region95: #{audionet_forward.1} parent=1 // pred_check_branch
      %199 = sbr.rel (0) target = $region97
    $region96: #{audionet_forward.1} parent=1 // pred_region
      %200 = dma.done [#allocation18], 16
    $region97: #{audionet_forward.1} parent=1 // pred_fallthru
      _
    // Predicated region
    $region98: #{audionet_forward.1} parent=1 // pred_check
      _
    $region99: #{audionet_forward.1} parent=1 // pred_check_branch
      %202 = sbr.rel (0) target = $region101
    $region100: #{audionet_forward.1} parent=1 // pred_region
      %203 = dma.done [#allocation21], 512
    $region101: #{audionet_forward.1} parent=1 // pred_fallthru
      _
    // Predicated region
    $region102: #{audionet_forward.1} parent=1 // pred_check
      _
    $region103: #{audionet_forward.1} parent=1 // pred_check_branch
      %205 = sbr.rel (0) target = $region105
    $region104: #{audionet_forward.1} parent=1 // pred_region
      %206 = dma.done [#allocation21], 16
    $region105: #{audionet_forward.1} parent=1 // pred_fallthru
      _
    %v208 = vld [vmem:[#allocation2] sm:$0xff]
    %v209 = vld [vmem:[#allocation2 + $0x8] sm:$0xff]
    %v210 = vld [vmem:[#allocation5] sm:$0xff]
    %v211 = vld [vmem:[#allocation5 + $0x8] sm:$0xff]
    %v212 = vld [vmem:[#allocation5 + $0x10] sm:$0xff]
    %v213 = vld [vmem:[#allocation5 + $0x18] sm:$0xff]
    %v214 = vld [vmem:[#allocation5 + $0x20] sm:$0xff]
    %v215 = vld [vmem:[#allocation5 + $0x28] sm:$0xff]
    %v216 = vld [vmem:[#allocation5 + $0x30] sm:$0xff]
    %v217 = vld [vmem:[#allocation5 + $0x38] sm:$0xff]
    %v218 = vld [vmem:[#allocation5 + $0x40] sm:$0xff]
    %v219 = vld [vmem:[#allocation5 + $0x48] sm:$0xff]
    %v220 = vld [vmem:[#allocation5 + $0x50] sm:$0xff]
    %v221 = vld [vmem:[#allocation5 + $0x58] sm:$0xff]
    %v222 = vld [vmem:[#allocation5 + $0x60] sm:$0xff]
    %v223 = vld [vmem:[#allocation5 + $0x68] sm:$0xff]
    %v224 = vld [vmem:[#allocation5 + $0x70] sm:$0xff]
    %v225 = vld [vmem:[#allocation5 + $0x78] sm:$0xff]
    %v226 = vld [vmem:[#allocation5 + $0x80] sm:$0xff]
    %v227 = vld [vmem:[#allocation5 + $0x88] sm:$0xff]
    %v228 = vld [vmem:[#allocation5 + $0x90] sm:$0xff]
    %v229 = vld [vmem:[#allocation5 + $0x98] sm:$0xff]
    %v230 = vld [vmem:[#allocation5 + $0xa0] sm:$0xff]
    %v231 = vld [vmem:[#allocation5 + $0xa8] sm:$0xff]
    %v232 = vld [vmem:[#allocation5 + $0xb0] sm:$0xff]
    %v233 = vld [vmem:[#allocation5 + $0xb8] sm:$0xff]
    %v234 = vld [vmem:[#allocation5 + $0xc0] sm:$0xff]
    %v235 = vld [vmem:[#allocation5 + $0xc8] sm:$0xff]
    %v236 = vld [vmem:[#allocation5 + $0xd0] sm:$0xff]
    %v237 = vld [vmem:[#allocation5 + $0xd8] sm:$0xff]
    %v238 = vld [vmem:[#allocation5 + $0xe0] sm:$0xff]
    %v239 = vld [vmem:[#allocation5 + $0xe8] sm:$0xff]
    %v240 = vld [vmem:[#allocation5 + $0xf0] sm:$0xff]
    %v241 = vld [vmem:[#allocation5 + $0xf8] sm:$0xff]
    %v242 = vld [vmem:[#allocation5 + $0x100] sm:$0xff]
    %v243 = vld [vmem:[#allocation5 + $0x108] sm:$0xff]
    %v244 = vld [vmem:[#allocation5 + $0x110] sm:$0xff]
    %v245 = vld [vmem:[#allocation5 + $0x118] sm:$0xff]
    %v246 = vld [vmem:[#allocation5 + $0x120] sm:$0xff]
    %v247 = vld [vmem:[#allocation5 + $0x128] sm:$0xff]
    %v248 = vld [vmem:[#allocation5 + $0x130] sm:$0xff]
    %v249 = vld [vmem:[#allocation5 + $0x138] sm:$0xff]
    %v250 = vld [vmem:[#allocation5 + $0x140] sm:$0xff]
    %v251 = vld [vmem:[#allocation5 + $0x148] sm:$0xff]
    %v252 = vld [vmem:[#allocation5 + $0x150] sm:$0xff]
    %v253 = vld [vmem:[#allocation5 + $0x158] sm:$0xff]
    %v254 = vld [vmem:[#allocation5 + $0x160] sm:$0xff]
    %v255 = vld [vmem:[#allocation5 + $0x168] sm:$0xff]
    %v256 = vld [vmem:[#allocation5 + $0x170] sm:$0xff]
    %v257 = vld [vmem:[#allocation5 + $0x178] sm:$0xff]
    %v258 = vld [vmem:[#allocation5 + $0x180] sm:$0xff]
    %v259 = vld [vmem:[#allocation5 + $0x188] sm:$0xff]
    %v260 = vld [vmem:[#allocation5 + $0x190] sm:$0xff]
    %v261 = vld [vmem:[#allocation5 + $0x198] sm:$0xff]
    %v262 = vld [vmem:[#allocation5 + $0x1a0] sm:$0xff]
    %v263 = vld [vmem:[#allocation5 + $0x1a8] sm:$0xff]
    %v264 = vld [vmem:[#allocation5 + $0x1b0] sm:$0xff]
    %v265 = vld [vmem:[#allocation5 + $0x1b8] sm:$0xff]
    %v266 = vld [vmem:[#allocation5 + $0x1c0] sm:$0xff]
    %v267 = vld [vmem:[#allocation5 + $0x1c8] sm:$0xff]
    %v268 = vld [vmem:[#allocation5 + $0x1d0] sm:$0xff]
    %v269 = vld [vmem:[#allocation5 + $0x1d8] sm:$0xff]
    %v270 = vld [vmem:[#allocation5 + $0x1e0] sm:$0xff]
    %v271 = vld [vmem:[#allocation5 + $0x1e8] sm:$0xff]
    %v272 = vld [vmem:[#allocation5 + $0x1f0] sm:$0xff]
    %v273 = vld [vmem:[#allocation5 + $0x1f8] sm:$0xff]
    %v274 = vld [vmem:[#allocation7] sm:$0x3]
    %v276 = vlaneseq
    %v277 = vshrl.u32 %v276, 7
    %v278 = vsub.s32 0, %v277
    %v279 = vrot.slane %v274, %v278
    %v280 = vlaneseq
    %v281 = vshrl.u32 %v280, 7
    %v282 = vsub.s32 1, %v281
    %v283 = vrot.slane %v274, %v282
    %v288 = vunpack.c.l.b16 %v208
    %v289 = vunpack.c.h.b16 %v208
    %v290 = vunpack.c.l.b16 %v209
    %v291 = vunpack.c.h.b16 %v209
    %v292 = vpack.c.b16 %v288, %v288
    %v293 = vpack.c.b16 %v289, %v289
    %v294 = vpack.c.b16 %v290, %v290
    %v295 = vpack.c.b16 %v291, %v291
    %v364 = vunpack.c.l.b16 %v210
    %v365 = vunpack.c.h.b16 %v210
    %v366 = vunpack.c.l.b16 %v211
    %v367 = vunpack.c.h.b16 %v211
    %v368 = vunpack.c.l.b16 %v212
    %v369 = vunpack.c.h.b16 %v212
    %v370 = vunpack.c.l.b16 %v213
    %v371 = vunpack.c.h.b16 %v213
    %v372 = vunpack.c.l.b16 %v214
    %v373 = vunpack.c.h.b16 %v214
    %v374 = vunpack.c.l.b16 %v215
    %v375 = vunpack.c.h.b16 %v215
    %v376 = vunpack.c.l.b16 %v216
    %v377 = vunpack.c.h.b16 %v216
    %v378 = vunpack.c.l.b16 %v217
    %v379 = vunpack.c.h.b16 %v217
    %v380 = vunpack.c.l.b16 %v218
    %v381 = vunpack.c.h.b16 %v218
    %v382 = vunpack.c.l.b16 %v219
    %v383 = vunpack.c.h.b16 %v219
    %v384 = vunpack.c.l.b16 %v220
    %v385 = vunpack.c.h.b16 %v220
    %v386 = vunpack.c.l.b16 %v221
    %v387 = vunpack.c.h.b16 %v221
    %v388 = vunpack.c.l.b16 %v222
    %v389 = vunpack.c.h.b16 %v222
    %v390 = vunpack.c.l.b16 %v223
    %v391 = vunpack.c.h.b16 %v223
    %v392 = vunpack.c.l.b16 %v224
    %v393 = vunpack.c.h.b16 %v224
    %v394 = vunpack.c.l.b16 %v225
    %v395 = vunpack.c.h.b16 %v225
    %v396 = vunpack.c.l.b16 %v226
    %v397 = vunpack.c.h.b16 %v226
    %v398 = vunpack.c.l.b16 %v227
    %v399 = vunpack.c.h.b16 %v227
    %v400 = vunpack.c.l.b16 %v228
    %v401 = vunpack.c.h.b16 %v228
    %v402 = vunpack.c.l.b16 %v229
    %v403 = vunpack.c.h.b16 %v229
    %v404 = vunpack.c.l.b16 %v230
    %v405 = vunpack.c.h.b16 %v230
    %v406 = vunpack.c.l.b16 %v231
    %v407 = vunpack.c.h.b16 %v231
    %v408 = vunpack.c.l.b16 %v232
    %v409 = vunpack.c.h.b16 %v232
    %v410 = vunpack.c.l.b16 %v233
    %v411 = vunpack.c.h.b16 %v233
    %v412 = vunpack.c.l.b16 %v234
    %v413 = vunpack.c.h.b16 %v234
    %v414 = vunpack.c.l.b16 %v235
    %v415 = vunpack.c.h.b16 %v235
    %v416 = vunpack.c.l.b16 %v236
    %v417 = vunpack.c.h.b16 %v236
    %v418 = vunpack.c.l.b16 %v237
    %v419 = vunpack.c.h.b16 %v237
    %v420 = vunpack.c.l.b16 %v238
    %v421 = vunpack.c.h.b16 %v238
    %v422 = vunpack.c.l.b16 %v239
    %v423 = vunpack.c.h.b16 %v239
    %v424 = vunpack.c.l.b16 %v240
    %v425 = vunpack.c.h.b16 %v240
    %v426 = vunpack.c.l.b16 %v241
    %v427 = vunpack.c.h.b16 %v241
    %v428 = vunpack.c.l.b16 %v242
    %v429 = vunpack.c.h.b16 %v242
    %v430 = vunpack.c.l.b16 %v243
    %v431 = vunpack.c.h.b16 %v243
    %v432 = vunpack.c.l.b16 %v244
    %v433 = vunpack.c.h.b16 %v244
    %v434 = vunpack.c.l.b16 %v245
    %v435 = vunpack.c.h.b16 %v245
    %v436 = vunpack.c.l.b16 %v246
    %v437 = vunpack.c.h.b16 %v246
    %v438 = vunpack.c.l.b16 %v247
    %v439 = vunpack.c.h.b16 %v247
    %v440 = vunpack.c.l.b16 %v248
    %v441 = vunpack.c.h.b16 %v248
    %v442 = vunpack.c.l.b16 %v249
    %v443 = vunpack.c.h.b16 %v249
    %v444 = vunpack.c.l.b16 %v250
    %v445 = vunpack.c.h.b16 %v250
    %v446 = vunpack.c.l.b16 %v251
    %v447 = vunpack.c.h.b16 %v251
    %v448 = vunpack.c.l.b16 %v252
    %v449 = vunpack.c.h.b16 %v252
    %v450 = vunpack.c.l.b16 %v253
    %v451 = vunpack.c.h.b16 %v253
    %v452 = vunpack.c.l.b16 %v254
    %v453 = vunpack.c.h.b16 %v254
    %v454 = vunpack.c.l.b16 %v255
    %v455 = vunpack.c.h.b16 %v255
    %v456 = vunpack.c.l.b16 %v256
    %v457 = vunpack.c.h.b16 %v256
    %v458 = vunpack.c.l.b16 %v257
    %v459 = vunpack.c.h.b16 %v257
    %v460 = vunpack.c.l.b16 %v258
    %v461 = vunpack.c.h.b16 %v258
    %v462 = vunpack.c.l.b16 %v259
    %v463 = vunpack.c.h.b16 %v259
    %v464 = vunpack.c.l.b16 %v260
    %v465 = vunpack.c.h.b16 %v260
    %v466 = vunpack.c.l.b16 %v261
    %v467 = vunpack.c.h.b16 %v261
    %v468 = vunpack.c.l.b16 %v262
    %v469 = vunpack.c.h.b16 %v262
    %v470 = vunpack.c.l.b16 %v263
    %v471 = vunpack.c.h.b16 %v263
    %v472 = vunpack.c.l.b16 %v264
    %v473 = vunpack.c.h.b16 %v264
    %v474 = vunpack.c.l.b16 %v265
    %v475 = vunpack.c.h.b16 %v265
    %v476 = vunpack.c.l.b16 %v266
    %v477 = vunpack.c.h.b16 %v266
    %v478 = vunpack.c.l.b16 %v267
    %v479 = vunpack.c.h.b16 %v267
    %v480 = vunpack.c.l.b16 %v268
    %v481 = vunpack.c.h.b16 %v268
    %v482 = vunpack.c.l.b16 %v269
    %v483 = vunpack.c.h.b16 %v269
    %v484 = vunpack.c.l.b16 %v270
    %v485 = vunpack.c.h.b16 %v270
    %v486 = vunpack.c.l.b16 %v271
    %v487 = vunpack.c.h.b16 %v271
    %v488 = vunpack.c.l.b16 %v272
    %v489 = vunpack.c.h.b16 %v272
    %v490 = vunpack.c.l.b16 %v273
    %v491 = vunpack.c.h.b16 %v273
    %v492 = vpack.c.b16 %v366, %v364
    %v493 = vpack.c.b16 %v367, %v365
    %v494 = vpack.c.b16 %v370, %v368
    %v495 = vpack.c.b16 %v371, %v369
    %v496 = vpack.c.b16 %v374, %v372
    %v497 = vpack.c.b16 %v375, %v373
    %v498 = vpack.c.b16 %v378, %v376
    %v499 = vpack.c.b16 %v379, %v377
    %v500 = vpack.c.b16 %v382, %v380
    %v501 = vpack.c.b16 %v383, %v381
    %v502 = vpack.c.b16 %v386, %v384
    %v503 = vpack.c.b16 %v387, %v385
    %v504 = vpack.c.b16 %v390, %v388
    %v505 = vpack.c.b16 %v391, %v389
    %v506 = vpack.c.b16 %v394, %v392
    %v507 = vpack.c.b16 %v395, %v393
    %v508 = vpack.c.b16 %v398, %v396
    %v509 = vpack.c.b16 %v399, %v397
    %v510 = vpack.c.b16 %v402, %v400
    %v511 = vpack.c.b16 %v403, %v401
    %v512 = vpack.c.b16 %v406, %v404
    %v513 = vpack.c.b16 %v407, %v405
    %v514 = vpack.c.b16 %v410, %v408
    %v515 = vpack.c.b16 %v411, %v409
    %v516 = vpack.c.b16 %v414, %v412
    %v517 = vpack.c.b16 %v415, %v413
    %v518 = vpack.c.b16 %v418, %v416
    %v519 = vpack.c.b16 %v419, %v417
    %v520 = vpack.c.b16 %v422, %v420
    %v521 = vpack.c.b16 %v423, %v421
    %v522 = vpack.c.b16 %v426, %v424
    %v523 = vpack.c.b16 %v427, %v425
    %v524 = vpack.c.b16 %v430, %v428
    %v525 = vpack.c.b16 %v431, %v429
    %v526 = vpack.c.b16 %v434, %v432
    %v527 = vpack.c.b16 %v435, %v433
    %v528 = vpack.c.b16 %v438, %v436
    %v529 = vpack.c.b16 %v439, %v437
    %v530 = vpack.c.b16 %v442, %v440
    %v531 = vpack.c.b16 %v443, %v441
    %v532 = vpack.c.b16 %v446, %v444
    %v533 = vpack.c.b16 %v447, %v445
    %v534 = vpack.c.b16 %v450, %v448
    %v535 = vpack.c.b16 %v451, %v449
    %v536 = vpack.c.b16 %v454, %v452
    %v537 = vpack.c.b16 %v455, %v453
    %v538 = vpack.c.b16 %v458, %v456
    %v539 = vpack.c.b16 %v459, %v457
    %v540 = vpack.c.b16 %v462, %v460
    %v541 = vpack.c.b16 %v463, %v461
    %v542 = vpack.c.b16 %v466, %v464
    %v543 = vpack.c.b16 %v467, %v465
    %v544 = vpack.c.b16 %v470, %v468
    %v545 = vpack.c.b16 %v471, %v469
    %v546 = vpack.c.b16 %v474, %v472
    %v547 = vpack.c.b16 %v475, %v473
    %v548 = vpack.c.b16 %v478, %v476
    %v549 = vpack.c.b16 %v479, %v477
    %v550 = vpack.c.b16 %v482, %v480
    %v551 = vpack.c.b16 %v483, %v481
    %v552 = vpack.c.b16 %v486, %v484
    %v553 = vpack.c.b16 %v487, %v485
    %v554 = vpack.c.b16 %v490, %v488
    %v555 = vpack.c.b16 %v491, %v489
    %620 = vmatprep.subr.bf16.mxu0 %v493
    %621 = vmatpush1.bf16.msra.mxu0 %v492
    %622 = vmatprep.subr.bf16.mxu0 %v495
    %623 = vmatpush1.bf16.msra.mxu0 %v494
    %624 = vmatprep.subr.bf16.mxu0 %v497
    %625 = vmatpush1.bf16.msra.mxu0 %v496
    %626 = vmatprep.subr.bf16.mxu0 %v499
    %627 = vmatpush1.bf16.msra.mxu0 %v498
    %628 = vmatprep.subr.bf16.mxu0 %v501
    %629 = vmatpush1.bf16.msra.mxu0 %v500
    %630 = vmatprep.subr.bf16.mxu0 %v503
    %631 = vmatpush1.bf16.msra.mxu0 %v502
    %632 = vmatprep.subr.bf16.mxu0 %v505
    %633 = vmatpush1.bf16.msra.mxu0 %v504
    %634 = vmatprep.subr.bf16.mxu0 %v507
    %635 = vmatpush1.bf16.msra.mxu0 %v506
    %636 = vmatprep.subr.bf16.mxu0 %v509
    %637 = vmatpush1.bf16.msra.mxu0 %v508
    %638 = vmatprep.subr.bf16.mxu0 %v511
    %639 = vmatpush1.bf16.msra.mxu0 %v510
    %640 = vmatprep.subr.bf16.mxu0 %v513
    %641 = vmatpush1.bf16.msra.mxu0 %v512
    %642 = vmatprep.subr.bf16.mxu0 %v515
    %643 = vmatpush1.bf16.msra.mxu0 %v514
    %644 = vmatprep.subr.bf16.mxu0 %v517
    %645 = vmatpush1.bf16.msra.mxu0 %v516
    %646 = vmatprep.subr.bf16.mxu0 %v519
    %647 = vmatpush1.bf16.msra.mxu0 %v518
    %648 = vmatprep.subr.bf16.mxu0 %v521
    %649 = vmatpush1.bf16.msra.mxu0 %v520
    %650 = vmatprep.subr.bf16.mxu0 %v523
    %651 = vmatpush1.bf16.msra.mxu0 %v522
    %652 = vmatprep.mubr.bf16.mxu0 %v293
    %653 = vmatmul.mubr.bf16.gmra.mrb[0].mxu0 %v292
    %v654 = vpop.f32.mrb[0].mxu0
    %v655 = vadd.f32 %v279, %v654
    %v656 = vpop.f32.mrb[0].mxu0
    %v657 = vadd.f32 %v283, %v656
    %v658 = vpop.f32.mrb[0].mxu0
    %v659 = vpop.f32.mrb[0].mxu0
    %660 = vdwg.mxu0
    %661 = vmatprep.subr.bf16.mxu0 %v525
    %662 = vmatpush1.bf16.msra.mxu0 %v524
    %663 = vmatprep.subr.bf16.mxu0 %v527
    %664 = vmatpush1.bf16.msra.mxu0 %v526
    %665 = vmatprep.subr.bf16.mxu0 %v529
    %666 = vmatpush1.bf16.msra.mxu0 %v528
    %667 = vmatprep.subr.bf16.mxu0 %v531
    %668 = vmatpush1.bf16.msra.mxu0 %v530
    %669 = vmatprep.subr.bf16.mxu0 %v533
    %670 = vmatpush1.bf16.msra.mxu0 %v532
    %671 = vmatprep.subr.bf16.mxu0 %v535
    %672 = vmatpush1.bf16.msra.mxu0 %v534
    %673 = vmatprep.subr.bf16.mxu0 %v537
    %674 = vmatpush1.bf16.msra.mxu0 %v536
    %675 = vmatprep.subr.bf16.mxu0 %v539
    %676 = vmatpush1.bf16.msra.mxu0 %v538
    %677 = vmatprep.subr.bf16.mxu0 %v541
    %678 = vmatpush1.bf16.msra.mxu0 %v540
    %679 = vmatprep.subr.bf16.mxu0 %v543
    %680 = vmatpush1.bf16.msra.mxu0 %v542
    %681 = vmatprep.subr.bf16.mxu0 %v545
    %682 = vmatpush1.bf16.msra.mxu0 %v544
    %683 = vmatprep.subr.bf16.mxu0 %v547
    %684 = vmatpush1.bf16.msra.mxu0 %v546
    %685 = vmatprep.subr.bf16.mxu0 %v549
    %686 = vmatpush1.bf16.msra.mxu0 %v548
    %687 = vmatprep.subr.bf16.mxu0 %v551
    %688 = vmatpush1.bf16.msra.mxu0 %v550
    %689 = vmatprep.subr.bf16.mxu0 %v553
    %690 = vmatpush1.bf16.msra.mxu0 %v552
    %691 = vmatprep.subr.bf16.mxu0 %v555
    %692 = vmatpush1.bf16.msra.mxu0 %v554
    %693 = vmatprep.mubr.bf16.mxu0 %v295
    %694 = vmatmul.mubr.bf16.gmra.mrb[0].mxu0 %v294
    %v695 = vpop.f32.mrb[0].mxu0
    %v696 = vadd.f32 %v655, %v695
    %v697 = vpop.f32.mrb[0].mxu0
    %v698 = vadd.f32 %v657, %v697
    %v699 = vpop.f32.mrb[0].mxu0
    %v700 = vpop.f32.mrb[0].mxu0
    %701 = vdwg.mxu0
    %vm702 = vcmp.ge.f32.partialorder %v696, 0.0
    %vm703 = vcmp.ge.f32.partialorder %v698, 0.0
    %v704 = vmul.f32 %v696, 0.02
    %v705 = vmul.f32 %v698, 0.02
    %v706 = vsel %vm702, %v696, %v704
    %v707 = vsel %vm703, %v698, %v705
    %v708 = vpack.c.bf16 %v706, %v706
    %v709 = vpack.c.bf16 %v707, %v707
    %v710 = vld [vmem:[#allocation8] sm:$0xf]
    %v711 = vld [vmem:[#allocation8 + $0x4] sm:$0xf]
    %v712 = vld [vmem:[#allocation8 + $0x8] sm:$0xf]
    %v713 = vld [vmem:[#allocation8 + $0xc] sm:$0xf]
    %v714 = vld [vmem:[#allocation8 + $0x10] sm:$0xf]
    %v715 = vld [vmem:[#allocation8 + $0x14] sm:$0xf]
    %v716 = vld [vmem:[#allocation8 + $0x18] sm:$0xf]
    %v717 = vld [vmem:[#allocation8 + $0x1c] sm:$0xf]
    %v718 = vld [vmem:[#allocation8 + $0x20] sm:$0xf]
    %v719 = vld [vmem:[#allocation8 + $0x24] sm:$0xf]
    %v720 = vld [vmem:[#allocation8 + $0x28] sm:$0xf]
    %v721 = vld [vmem:[#allocation8 + $0x2c] sm:$0xf]
    %v722 = vld [vmem:[#allocation8 + $0x30] sm:$0xf]
    %v723 = vld [vmem:[#allocation8 + $0x34] sm:$0xf]
    %v724 = vld [vmem:[#allocation8 + $0x38] sm:$0xf]
    %v725 = vld [vmem:[#allocation8 + $0x3c] sm:$0xf]
    %v726 = vld [vmem:[#allocation8 + $0x40] sm:$0xf]
    %v727 = vld [vmem:[#allocation8 + $0x44] sm:$0xf]
    %v728 = vld [vmem:[#allocation8 + $0x48] sm:$0xf]
    %v729 = vld [vmem:[#allocation8 + $0x4c] sm:$0xf]
    %v730 = vld [vmem:[#allocation8 + $0x50] sm:$0xf]
    %v731 = vld [vmem:[#allocation8 + $0x54] sm:$0xf]
    %v732 = vld [vmem:[#allocation8 + $0x58] sm:$0xf]
    %v733 = vld [vmem:[#allocation8 + $0x5c] sm:$0xf]
    %v734 = vld [vmem:[#allocation8 + $0x60] sm:$0xf]
    %v735 = vld [vmem:[#allocation8 + $0x64] sm:$0xf]
    %v736 = vld [vmem:[#allocation8 + $0x68] sm:$0xf]
    %v737 = vld [vmem:[#allocation8 + $0x6c] sm:$0xf]
    %v738 = vld [vmem:[#allocation8 + $0x70] sm:$0xf]
    %v739 = vld [vmem:[#allocation8 + $0x74] sm:$0xf]
    %v740 = vld [vmem:[#allocation8 + $0x78] sm:$0xf]
    %v741 = vld [vmem:[#allocation8 + $0x7c] sm:$0xf]
    %v742 = vld [vmem:[#allocation10] sm:$0x1]
    %v744 = vlaneseq
    %v745 = vshrl.u32 %v744, 7
    %v746 = vsub.s32 0, %v745
    %v747 = vrot.slane %v742, %v746
    %v781 = vunpack.c.l.b16 %v710
    %v782 = vunpack.c.l.b16 %v711
    %v783 = vunpack.c.l.b16 %v712
    %v784 = vunpack.c.l.b16 %v713
    %v785 = vunpack.c.l.b16 %v714
    %v786 = vunpack.c.l.b16 %v715
    %v787 = vunpack.c.l.b16 %v716
    %v788 = vunpack.c.l.b16 %v717
    %v789 = vunpack.c.l.b16 %v718
    %v790 = vunpack.c.l.b16 %v719
    %v791 = vunpack.c.l.b16 %v720
    %v792 = vunpack.c.l.b16 %v721
    %v793 = vunpack.c.l.b16 %v722
    %v794 = vunpack.c.l.b16 %v723
    %v795 = vunpack.c.l.b16 %v724
    %v796 = vunpack.c.l.b16 %v725
    %v797 = vunpack.c.l.b16 %v726
    %v798 = vunpack.c.l.b16 %v727
    %v799 = vunpack.c.l.b16 %v728
    %v800 = vunpack.c.l.b16 %v729
    %v801 = vunpack.c.l.b16 %v730
    %v802 = vunpack.c.l.b16 %v731
    %v803 = vunpack.c.l.b16 %v732
    %v804 = vunpack.c.l.b16 %v733
    %v805 = vunpack.c.l.b16 %v734
    %v806 = vunpack.c.l.b16 %v735
    %v807 = vunpack.c.l.b16 %v736
    %v808 = vunpack.c.l.b16 %v737
    %v809 = vunpack.c.l.b16 %v738
    %v810 = vunpack.c.l.b16 %v739
    %v811 = vunpack.c.l.b16 %v740
    %v812 = vunpack.c.l.b16 %v741
    %v813 = vpack.c.b16 %v782, %v781
    %v814 = vpack.c.b16 %v784, %v783
    %v815 = vpack.c.b16 %v786, %v785
    %v816 = vpack.c.b16 %v788, %v787
    %v817 = vpack.c.b16 %v790, %v789
    %v818 = vpack.c.b16 %v792, %v791
    %v819 = vpack.c.b16 %v794, %v793
    %v820 = vpack.c.b16 %v796, %v795
    %v821 = vpack.c.b16 %v798, %v797
    %v822 = vpack.c.b16 %v800, %v799
    %v823 = vpack.c.b16 %v802, %v801
    %v824 = vpack.c.b16 %v804, %v803
    %v825 = vpack.c.b16 %v806, %v805
    %v826 = vpack.c.b16 %v808, %v807
    %v827 = vpack.c.b16 %v810, %v809
    %v828 = vpack.c.b16 %v812, %v811
    %845 = vmatprep.subr.bf16.mxu0 0
    %846 = vmatpush1.bf16.msra.mxu0 %v813
    %847 = vmatprep.subr.bf16.mxu0 0
    %848 = vmatpush1.bf16.msra.mxu0 %v814
    %849 = vmatprep.subr.bf16.mxu0 0
    %850 = vmatpush1.bf16.msra.mxu0 %v815
    %851 = vmatprep.subr.bf16.mxu0 0
    %852 = vmatpush1.bf16.msra.mxu0 %v816
    %853 = vmatprep.subr.bf16.mxu0 0
    %854 = vmatpush1.bf16.msra.mxu0 %v817
    %855 = vmatprep.subr.bf16.mxu0 0
    %856 = vmatpush1.bf16.msra.mxu0 %v818
    %857 = vmatprep.subr.bf16.mxu0 0
    %858 = vmatpush1.bf16.msra.mxu0 %v819
    %859 = vmatprep.subr.bf16.mxu0 0
    %860 = vmatpush1.bf16.msra.mxu0 %v820
    %861 = vmatprep.subr.bf16.mxu0 0
    %862 = vmatpush1.bf16.msra.mxu0 %v821
    %863 = vmatprep.subr.bf16.mxu0 0
    %864 = vmatpush1.bf16.msra.mxu0 %v822
    %865 = vmatprep.subr.bf16.mxu0 0
    %866 = vmatpush1.bf16.msra.mxu0 %v823
    %867 = vmatprep.subr.bf16.mxu0 0
    %868 = vmatpush1.bf16.msra.mxu0 %v824
    %869 = vmatprep.subr.bf16.mxu0 0
    %870 = vmatpush1.bf16.msra.mxu0 %v825
    %871 = vmatprep.subr.bf16.mxu0 0
    %872 = vmatpush1.bf16.msra.mxu0 %v826
    %873 = vmatprep.subr.bf16.mxu0 0
    %874 = vmatpush1.bf16.msra.mxu0 %v827
    %875 = vmatprep.subr.bf16.mxu0 0
    %876 = vmatpush1.bf16.msra.mxu0 %v828
    %877 = vmatprep.mubr.bf16.mxu0 %v709
    %878 = vmatmul.mubr.bf16.gmra.mrb[0].mxu0 %v708
    %v879 = vpop.f32.mrb[0].mxu0
    %v880 = vadd.f32 %v747, %v879
    %v881 = vpop.f32.mrb[0].mxu0
    %v882 = vpop.f32.mrb[0].mxu0
    %v883 = vpop.f32.mrb[0].mxu0
    %884 = vdwg.mxu0
    %vm885 = vcmp.ge.f32.partialorder %v880, 0.0
    %v886 = vmul.f32 %v880, 0.02
    %v887 = vsel %vm885, %v880, %v886
    %v888 = vpack.c.bf16 %v887, %v887
    %v889 = vld [vmem:[#allocation11] sm:$0xf]
    %v890 = vld [vmem:[#allocation11 + $0x4] sm:$0xf]
    %v891 = vld [vmem:[#allocation11 + $0x8] sm:$0xf]
    %v892 = vld [vmem:[#allocation11 + $0xc] sm:$0xf]
    %v893 = vld [vmem:[#allocation11 + $0x10] sm:$0xf]
    %v894 = vld [vmem:[#allocation11 + $0x14] sm:$0xf]
    %v895 = vld [vmem:[#allocation11 + $0x18] sm:$0xf]
    %v896 = vld [vmem:[#allocation11 + $0x1c] sm:$0xf]
    %v897 = vld [vmem:[#allocation11 + $0x20] sm:$0xf]
    %v898 = vld [vmem:[#allocation11 + $0x24] sm:$0xf]
    %v899 = vld [vmem:[#allocation11 + $0x28] sm:$0xf]
    %v900 = vld [vmem:[#allocation11 + $0x2c] sm:$0xf]
    %v901 = vld [vmem:[#allocation11 + $0x30] sm:$0xf]
    %v902 = vld [vmem:[#allocation11 + $0x34] sm:$0xf]
    %v903 = vld [vmem:[#allocation11 + $0x38] sm:$0xf]
    %v904 = vld [vmem:[#allocation11 + $0x3c] sm:$0xf]
    %v905 = vld [vmem:[#allocation13] sm:$0x1]
    %v907 = vlaneseq
    %v908 = vshrl.u32 %v907, 7
    %v909 = vsub.s32 0, %v908
    %v910 = vrot.slane %v905, %v909
    %v928 = vunpack.c.l.b16 %v889
    %v929 = vunpack.c.l.b16 %v890
    %v930 = vunpack.c.l.b16 %v891
    %v931 = vunpack.c.l.b16 %v892
    %v932 = vunpack.c.l.b16 %v893
    %v933 = vunpack.c.l.b16 %v894
    %v934 = vunpack.c.l.b16 %v895
    %v935 = vunpack.c.l.b16 %v896
    %v936 = vunpack.c.l.b16 %v897
    %v937 = vunpack.c.l.b16 %v898
    %v938 = vunpack.c.l.b16 %v899
    %v939 = vunpack.c.l.b16 %v900
    %v940 = vunpack.c.l.b16 %v901
    %v941 = vunpack.c.l.b16 %v902
    %v942 = vunpack.c.l.b16 %v903
    %v943 = vunpack.c.l.b16 %v904
    %v944 = vpack.c.b16 %v929, %v928
    %v945 = vpack.c.b16 %v931, %v930
    %v946 = vpack.c.b16 %v933, %v932
    %v947 = vpack.c.b16 %v935, %v934
    %v948 = vpack.c.b16 %v937, %v936
    %v949 = vpack.c.b16 %v939, %v938
    %v950 = vpack.c.b16 %v941, %v940
    %v951 = vpack.c.b16 %v943, %v942
    %960 = vmatprep.subr.bf16.mxu0 0
    %961 = vmatpush1.bf16.msra.mxu0 %v944
    %962 = vmatprep.subr.bf16.mxu0 0
    %963 = vmatpush1.bf16.msra.mxu0 %v945
    %964 = vmatprep.subr.bf16.mxu0 0
    %965 = vmatpush1.bf16.msra.mxu0 %v946
    %966 = vmatprep.subr.bf16.mxu0 0
    %967 = vmatpush1.bf16.msra.mxu0 %v947
    %968 = vmatprep.subr.bf16.mxu0 0
    %969 = vmatpush1.bf16.msra.mxu0 %v948
    %970 = vmatprep.subr.bf16.mxu0 0
    %971 = vmatpush1.bf16.msra.mxu0 %v949
    %972 = vmatprep.subr.bf16.mxu0 0
    %973 = vmatpush1.bf16.msra.mxu0 %v950
    %974 = vmatprep.subr.bf16.mxu0 0
    %975 = vmatpush1.bf16.msra.mxu0 %v951
    %976 = vmatprep.subr.bf16.mxu0 0
    %977 = vmatpush1.bf16.msra.mxu0 0
    %978 = vmatprep.subr.bf16.mxu0 0
    %979 = vmatpush1.bf16.msra.mxu0 0
    %980 = vmatprep.subr.bf16.mxu0 0
    %981 = vmatpush1.bf16.msra.mxu0 0
    %982 = vmatprep.subr.bf16.mxu0 0
    %983 = vmatpush1.bf16.msra.mxu0 0
    %984 = vmatprep.subr.bf16.mxu0 0
    %985 = vmatpush1.bf16.msra.mxu0 0
    %986 = vmatprep.subr.bf16.mxu0 0
    %987 = vmatpush1.bf16.msra.mxu0 0
    %988 = vmatprep.subr.bf16.mxu0 0
    %989 = vmatpush1.bf16.msra.mxu0 0
    %990 = vmatprep.subr.bf16.mxu0 0
    %991 = vmatpush1.bf16.msra.mxu0 0
    %992 = vmatprep.mubr.bf16.mxu0 0
    %993 = vmatmul.mubr.bf16.gmra.mrb[0].mxu0 %v888
    %v994 = vpop.f32.mrb[0].mxu0
    %v995 = vadd.f32 %v910, %v994
    %v996 = vpop.f32.mrb[0].mxu0
    %v997 = vpop.f32.mrb[0].mxu0
    %v998 = vpop.f32.mrb[0].mxu0
    %999 = vdwg.mxu0
    %vm1000 = vcmp.ge.f32.partialorder %v995, 0.0
    %v1001 = vmul.f32 %v995, 0.02
    %v1002 = vsel %vm1000, %v995, %v1001
    %v1003 = vpack.c.bf16 %v1002, %v1002
    %v1004 = vld [vmem:[#allocation14] sm:$0xf]
    %v1005 = vld [vmem:[#allocation14 + $0x4] sm:$0xf]
    %v1006 = vld [vmem:[#allocation14 + $0x8] sm:$0xf]
    %v1007 = vld [vmem:[#allocation14 + $0xc] sm:$0xf]
    %v1008 = vld [vmem:[#allocation14 + $0x10] sm:$0xf]
    %v1009 = vld [vmem:[#allocation14 + $0x14] sm:$0xf]
    %v1010 = vld [vmem:[#allocation14 + $0x18] sm:$0xf]
    %v1011 = vld [vmem:[#allocation14 + $0x1c] sm:$0xf]
    %v1012 = vld [vmem:[#allocation14 + $0x20] sm:$0xf]
    %v1013 = vld [vmem:[#allocation14 + $0x24] sm:$0xf]
    %v1014 = vld [vmem:[#allocation14 + $0x28] sm:$0xf]
    %v1015 = vld [vmem:[#allocation14 + $0x2c] sm:$0xf]
    %v1016 = vld [vmem:[#allocation14 + $0x30] sm:$0xf]
    %v1017 = vld [vmem:[#allocation14 + $0x34] sm:$0xf]
    %v1018 = vld [vmem:[#allocation14 + $0x38] sm:$0xf]
    %v1019 = vld [vmem:[#allocation14 + $0x3c] sm:$0xf]
    %v1020 = vld [vmem:[#allocation16] sm:$0x1]
    %v1022 = vlaneseq
    %v1023 = vshrl.u32 %v1022, 7
    %v1024 = vsub.s32 0, %v1023
    %v1025 = vrot.slane %v1020, %v1024
    %v1043 = vunpack.c.l.b16 %v1004
    %v1044 = vunpack.c.l.b16 %v1005
    %v1045 = vunpack.c.l.b16 %v1006
    %v1046 = vunpack.c.l.b16 %v1007
    %v1047 = vunpack.c.l.b16 %v1008
    %v1048 = vunpack.c.l.b16 %v1009
    %v1049 = vunpack.c.l.b16 %v1010
    %v1050 = vunpack.c.l.b16 %v1011
    %v1051 = vunpack.c.l.b16 %v1012
    %v1052 = vunpack.c.l.b16 %v1013
    %v1053 = vunpack.c.l.b16 %v1014
    %v1054 = vunpack.c.l.b16 %v1015
    %v1055 = vunpack.c.l.b16 %v1016
    %v1056 = vunpack.c.l.b16 %v1017
    %v1057 = vunpack.c.l.b16 %v1018
    %v1058 = vunpack.c.l.b16 %v1019
    %v1059 = vpack.c.b16 %v1044, %v1043
    %v1060 = vpack.c.b16 %v1046, %v1045
    %v1061 = vpack.c.b16 %v1048, %v1047
    %v1062 = vpack.c.b16 %v1050, %v1049
    %v1063 = vpack.c.b16 %v1052, %v1051
    %v1064 = vpack.c.b16 %v1054, %v1053
    %v1065 = vpack.c.b16 %v1056, %v1055
    %v1066 = vpack.c.b16 %v1058, %v1057
    %1075 = vmatprep.subr.bf16.mxu0 0
    %1076 = vmatpush1.bf16.msra.mxu0 %v1059
    %1077 = vmatprep.subr.bf16.mxu0 0
    %1078 = vmatpush1.bf16.msra.mxu0 %v1060
    %1079 = vmatprep.subr.bf16.mxu0 0
    %1080 = vmatpush1.bf16.msra.mxu0 %v1061
    %1081 = vmatprep.subr.bf16.mxu0 0
    %1082 = vmatpush1.bf16.msra.mxu0 %v1062
    %1083 = vmatprep.subr.bf16.mxu0 0
    %1084 = vmatpush1.bf16.msra.mxu0 %v1063
    %1085 = vmatprep.subr.bf16.mxu0 0
    %1086 = vmatpush1.bf16.msra.mxu0 %v1064
    %1087 = vmatprep.subr.bf16.mxu0 0
    %1088 = vmatpush1.bf16.msra.mxu0 %v1065
    %1089 = vmatprep.subr.bf16.mxu0 0
    %1090 = vmatpush1.bf16.msra.mxu0 %v1066
    %1091 = vmatprep.subr.bf16.mxu0 0
    %1092 = vmatpush1.bf16.msra.mxu0 0
    %1093 = vmatprep.subr.bf16.mxu0 0
    %1094 = vmatpush1.bf16.msra.mxu0 0
    %1095 = vmatprep.subr.bf16.mxu0 0
    %1096 = vmatpush1.bf16.msra.mxu0 0
    %1097 = vmatprep.subr.bf16.mxu0 0
    %1098 = vmatpush1.bf16.msra.mxu0 0
    %1099 = vmatprep.subr.bf16.mxu0 0
    %1100 = vmatpush1.bf16.msra.mxu0 0
    %1101 = vmatprep.subr.bf16.mxu0 0
    %1102 = vmatpush1.bf16.msra.mxu0 0
    %1103 = vmatprep.subr.bf16.mxu0 0
    %1104 = vmatpush1.bf16.msra.mxu0 0
    %1105 = vmatprep.subr.bf16.mxu0 0
    %1106 = vmatpush1.bf16.msra.mxu0 0
    %1107 = vmatprep.mubr.bf16.mxu0 0
    %1108 = vmatmul.mubr.bf16.gmra.mrb[0].mxu0 %v1003
    %v1109 = vpop.f32.mrb[0].mxu0
    %v1110 = vadd.f32 %v1025, %v1109
    %v1111 = vpop.f32.mrb[0].mxu0
    %v1112 = vpop.f32.mrb[0].mxu0
    %v1113 = vpop.f32.mrb[0].mxu0
    %1114 = vdwg.mxu0
    %vm1115 = vcmp.ge.f32.partialorder %v1110, 0.0
    %v1116 = vmul.f32 %v1110, 0.02
    %v1117 = vsel %vm1115, %v1110, %v1116
    %v1118 = vpack.c.bf16 %v1117, %v1117
    %v1119 = vld [vmem:[#allocation17] sm:$0xf]
    %v1120 = vld [vmem:[#allocation17 + $0x4] sm:$0xf]
    %v1121 = vld [vmem:[#allocation17 + $0x8] sm:$0xf]
    %v1122 = vld [vmem:[#allocation17 + $0xc] sm:$0xf]
    %v1123 = vld [vmem:[#allocation17 + $0x10] sm:$0xf]
    %v1124 = vld [vmem:[#allocation17 + $0x14] sm:$0xf]
    %v1125 = vld [vmem:[#allocation17 + $0x18] sm:$0xf]
    %v1126 = vld [vmem:[#allocation17 + $0x1c] sm:$0xf]
    %v1127 = vld [vmem:[#allocation19] sm:$0x1]
    %v1129 = vlaneseq
    %v1130 = vshrl.u32 %v1129, 7
    %v1131 = vsub.s32 0, %v1130
    %v1132 = vrot.slane %v1127, %v1131
    %v1142 = vunpack.c.l.b16 %v1119
    %v1143 = vunpack.c.l.b16 %v1120
    %v1144 = vunpack.c.l.b16 %v1121
    %v1145 = vunpack.c.l.b16 %v1122
    %v1146 = vunpack.c.l.b16 %v1123
    %v1147 = vunpack.c.l.b16 %v1124
    %v1148 = vunpack.c.l.b16 %v1125
    %v1149 = vunpack.c.l.b16 %v1126
    %v1150 = vpack.c.b16 %v1143, %v1142
    %v1151 = vpack.c.b16 %v1145, %v1144
    %v1152 = vpack.c.b16 %v1147, %v1146
    %v1153 = vpack.c.b16 %v1149, %v1148
    %vm1158 = vcmask 523264
    %v1160 = vsel %vm1158, %v1118, 0
    %1162 = vmatprep.subr.bf16.mxu0 0
    %1163 = vmatpush1.bf16.msra.mxu0 %v1150
    %1164 = vmatprep.subr.bf16.mxu0 0
    %1165 = vmatpush1.bf16.msra.mxu0 %v1151
    %1166 = vmatprep.subr.bf16.mxu0 0
    %1167 = vmatpush1.bf16.msra.mxu0 %v1152
    %1168 = vmatprep.subr.bf16.mxu0 0
    %1169 = vmatpush1.bf16.msra.mxu0 %v1153
    %1170 = vmatprep.subr.bf16.mxu0 0
    %1171 = vmatpush1.bf16.msra.mxu0 0
    %1172 = vmatprep.subr.bf16.mxu0 0
    %1173 = vmatpush1.bf16.msra.mxu0 0
    %1174 = vmatprep.subr.bf16.mxu0 0
    %1175 = vmatpush1.bf16.msra.mxu0 0
    %1176 = vmatprep.subr.bf16.mxu0 0
    %1177 = vmatpush1.bf16.msra.mxu0 0
    %1178 = vmatprep.subr.bf16.mxu0 0
    %1179 = vmatpush1.bf16.msra.mxu0 0
    %1180 = vmatprep.subr.bf16.mxu0 0
    %1181 = vmatpush1.bf16.msra.mxu0 0
    %1182 = vmatprep.subr.bf16.mxu0 0
    %1183 = vmatpush1.bf16.msra.mxu0 0
    %1184 = vmatprep.subr.bf16.mxu0 0
    %1185 = vmatpush1.bf16.msra.mxu0 0
    %1186 = vmatprep.subr.bf16.mxu0 0
    %1187 = vmatpush1.bf16.msra.mxu0 0
    %1188 = vmatprep.subr.bf16.mxu0 0
    %1189 = vmatpush1.bf16.msra.mxu0 0
    %1190 = vmatprep.subr.bf16.mxu0 0
    %1191 = vmatpush1.bf16.msra.mxu0 0
    %1192 = vmatprep.subr.bf16.mxu0 0
    %1193 = vmatpush1.bf16.msra.mxu0 0
    %1194 = vmatprep.mubr.bf16.mxu0 0
    %1195 = vmatmul.mubr.bf16.gmra.mrb[0].mxu0 %v1160
    %v1196 = vpop.f32.mrb[0].mxu0
    %v1197 = vadd.f32 %v1132, %v1196
    %v1198 = vpop.f32.mrb[0].mxu0
    %v1199 = vpop.f32.mrb[0].mxu0
    %v1200 = vpop.f32.mrb[0].mxu0
    %1201 = vdwg.mxu0
    %vm1202 = vcmp.ge.f32.partialorder %v1197, 0.0
    %v1203 = vmul.f32 %v1197, 0.02
    %v1204 = vsel %vm1202, %v1197, %v1203
    %v1205 = vpack.c.bf16 %v1204, %v1204
    %v1206 = vld [vmem:[#allocation20] sm:$0xf]
    %v1207 = vld [vmem:[#allocation20 + $0x4] sm:$0xf]
    %v1208 = vld [vmem:[#allocation20 + $0x8] sm:$0xf]
    %v1209 = vld [vmem:[#allocation20 + $0xc] sm:$0xf]
    %v1210 = vld [vmem:[#allocation20 + $0x10] sm:$0xf]
    %v1211 = vld [vmem:[#allocation20 + $0x14] sm:$0xf]
    %v1212 = vld [vmem:[#allocation20 + $0x18] sm:$0xf]
    %v1213 = vld [vmem:[#allocation20 + $0x1c] sm:$0xf]
    %v1214 = vld [vmem:[#allocation22] sm:$0x1]
    %v1216 = vlaneseq
    %v1217 = vshrl.u32 %v1216, 7
    %v1218 = vsub.s32 0, %v1217
    %v1219 = vrot.slane %v1214, %v1218
    %v1229 = vunpack.c.l.b16 %v1206
    %v1230 = vunpack.c.l.b16 %v1207
    %v1231 = vunpack.c.l.b16 %v1208
    %v1232 = vunpack.c.l.b16 %v1209
    %v1233 = vunpack.c.l.b16 %v1210
    %v1234 = vunpack.c.l.b16 %v1211
    %v1235 = vunpack.c.l.b16 %v1212
    %v1236 = vunpack.c.l.b16 %v1213
    %v1237 = vpack.c.b16 %v1230, %v1229
    %v1238 = vpack.c.b16 %v1232, %v1231
    %v1239 = vpack.c.b16 %v1234, %v1233
    %v1240 = vpack.c.b16 %v1236, %v1235
    %v1246 = vsel %vm1158, %v1205, 0
    %1248 = vmatprep.subr.bf16.mxu0 0
    %1249 = vmatpush1.bf16.msra.mxu0 %v1237
    %1250 = vmatprep.subr.bf16.mxu0 0
    %1251 = vmatpush1.bf16.msra.mxu0 %v1238
    %1252 = vmatprep.subr.bf16.mxu0 0
    %1253 = vmatpush1.bf16.msra.mxu0 %v1239
    %1254 = vmatprep.subr.bf16.mxu0 0
    %1255 = vmatpush1.bf16.msra.mxu0 %v1240
    %1256 = vmatprep.subr.bf16.mxu0 0
    %1257 = vmatpush1.bf16.msra.mxu0 0
    %1258 = vmatprep.subr.bf16.mxu0 0
    %1259 = vmatpush1.bf16.msra.mxu0 0
    %1260 = vmatprep.subr.bf16.mxu0 0
    %1261 = vmatpush1.bf16.msra.mxu0 0
    %1262 = vmatprep.subr.bf16.mxu0 0
    %1263 = vmatpush1.bf16.msra.mxu0 0
    %1264 = vmatprep.subr.bf16.mxu0 0
    %1265 = vmatpush1.bf16.msra.mxu0 0
    %1266 = vmatprep.subr.bf16.mxu0 0
    %1267 = vmatpush1.bf16.msra.mxu0 0
    %1268 = vmatprep.subr.bf16.mxu0 0
    %1269 = vmatpush1.bf16.msra.mxu0 0
    %1270 = vmatprep.subr.bf16.mxu0 0
    %1271 = vmatpush1.bf16.msra.mxu0 0
    %1272 = vmatprep.subr.bf16.mxu0 0
    %1273 = vmatpush1.bf16.msra.mxu0 0
    %1274 = vmatprep.subr.bf16.mxu0 0
    %1275 = vmatpush1.bf16.msra.mxu0 0
    %1276 = vmatprep.subr.bf16.mxu0 0
    %1277 = vmatpush1.bf16.msra.mxu0 0
    %1278 = vmatprep.subr.bf16.mxu0 0
    %1279 = vmatpush1.bf16.msra.mxu0 0
    %1280 = vmatprep.mubr.bf16.mxu0 0
    %1281 = vmatmul.mubr.bf16.gmra.mrb[0].mxu0 %v1246
    %v1282 = vpop.f32.mrb[0].mxu0
    %v1283 = vadd.f32 %v1219, %v1282
    %v1284 = vpop.f32.mrb[0].mxu0
    %v1285 = vpop.f32.mrb[0].mxu0
    %v1286 = vpop.f32.mrb[0].mxu0
    %1287 = vdwg.mxu0
    %1288 = vst.msk [vmem:[#allocation23] sm:$0xff] %vm1158, %v1283
    // Predicated region
    $region106: #{audionet_forward.1} parent=1 // pred_check
      _
    $region107: #{audionet_forward.1} parent=1 // pred_check_branch
      %1290 = sbr.rel (0) target = $region109
    $region108: #{audionet_forward.1} parent=1 // pred_region
      %s1292 = ssub.s32 128, 128
      %1293 = vsyncadd [#allocation4], %s1292
      %s1295 = sshll.u32 [#allocation23], 4
      %s1296 = int_to_ptr.vmem [resolvable:$true] %s1295
      %1298 = dma.vmem_to_hbm [thread:$0]  %s1296, 128, %s13, [#allocation4]
    $region109: #{audionet_forward.1} parent=1 // pred_fallthru
      _
    // Predicated region
    $region110: #{audionet_forward.1} parent=1 // pred_check
      _
    $region111: #{audionet_forward.1} parent=1 // pred_check_branch
      %1300 = sbr.rel (0) target = $region113
    $region112: #{audionet_forward.1} parent=1 // pred_region
      %1301 = dma.done [#allocation4], 128
    $region113: #{audionet_forward.1} parent=1 // pred_fallthru
      _
    %1302 = vsyncpa [#allocation3], 1
    %1303 = vsyncpa [#allocation6], 1
    %1304 = vsyncpa [#allocation9], 1
    %1305 = vsyncpa [#allocation12], 1
    %1306 = vsyncpa [#allocation15], 1
    %1307 = vsyncpa [#allocation18], 1
    %1308 = vsyncpa [#allocation21], 1
    %1309 = vsyncpa [#allocation4], 1

</llo_original>
